<compile_context>
chip_gen: v5e
topology: v5e:2x2
jax: 0.10.0
libtpu: 0.0.40
codegen_flags: <defaults>
</compile_context>

<pallas_src>
import jax
import jax.numpy as jnp
from jax.experimental import pallas as pl
from jax.experimental.pallas import tpu as pltpu


def _dice_kernel(pred_ref, gt_ref, out_ref, inse_acc, l_acc, r_acc):
    """Refs:
      pred_ref, gt_ref : (N, TH, W) VMEM tiles (channel 1 already selected by
                         the BlockSpec; native input dtype).
      out_ref          : (1, 1, 1) VMEM block — per-object loss.
      inse_acc/l_acc/r_acc : (N, W) f32 VMEM scratch, persistent across the
                         H-tile (reduction) grid axis.
    Grid: (object, h_tile).
    """
    h = pl.program_id(1)
    nh = pl.num_programs(1)

    @pl.when(h == 0)
    def _init():
        inse_acc[...] = jnp.zeros_like(inse_acc)
        l_acc[...] = jnp.zeros_like(l_acc)
        r_acc[...] = jnp.zeros_like(r_acc)

    x = pred_ref[...].astype(jnp.float32)      # (N, TH, W)
    y = gt_ref[...].astype(jnp.float32)

    # Reduce over the H (sublane) axis only; keep lanes (W) wide. The costly
    # cross-lane reduction happens once per object, in the finalize below.
    inse_acc[...] += jnp.sum(x * y, axis=1)    # (N, W)
    l_acc[...] += jnp.sum(x, axis=1)
    r_acc[...] += jnp.sum(y, axis=1)

    @pl.when(h == nh - 1)
    def _finalize():
        smooth = jnp.float32(1e-05)
        n = inse_acc.shape[0]                  # full batch (block covers all N)
        inse = jnp.sum(inse_acc[...], axis=1, keepdims=True)   # (N, 1)
        l = jnp.sum(l_acc[...], axis=1, keepdims=True)
        r = jnp.sum(r_acc[...], axis=1, keepdims=True)
        dice = (jnp.float32(2.0) * inse + smooth) / (l + r + smooth)
        loss = jnp.float32(1.0) - jnp.sum(dice) / jnp.float32(n)
        out_ref[...] = jnp.full((1, 1, 1), loss, dtype=jnp.float32)


def _choose_h_tile(n, h, w, itemsize, budget_bytes=2 << 20):
    """Largest multiple-of-8 divisor of H whose (N, TH, W) tile fits budget."""
    if h % 8 != 0:
        return h            # full-H block (block dim == array dim is allowed)
    best = 8
    for cand in range(8, h + 1, 8):
        if h % cand == 0 and n * cand * w * itemsize <= budget_bytes:
            best = cand
    return best


def binary_dice_loss_multiobj_stacked(pred_stack, gt_stack):
    """pred_stack, gt_stack: (num_objs, N, C, H, W); native dtypes OK."""
    num_objs, n, c, h, w = pred_stack.shape
    go, gn, gc, gh, gw = gt_stack.shape
    assert (go, gn, gh, gw) == (num_objs, n, h, w)
    assert c >= 2 and gc >= 2

    itemsize = max(pred_stack.dtype.itemsize, gt_stack.dtype.itemsize)
    th = _choose_h_tile(n, h, w, itemsize)
    nh = h // th

    # Channel-1 selection done by the BlockSpec: squeezed object + channel dims.
    in_block = (pl.Squeezed(), n, pl.Squeezed(), th, w)

    def in_index_map(o, hi):
        # object o, full batch, channel 1, H-tile hi, full W.
        return (o, 0, 1, hi, 0)

    per_obj = pl.pallas_call(
        _dice_kernel,
        out_shape=jax.ShapeDtypeStruct((num_objs, 1, 1), jnp.float32),
        grid=(num_objs, nh),
        in_specs=[
            pl.BlockSpec(in_block, in_index_map),
            pl.BlockSpec(in_block, in_index_map),
        ],
        out_specs=pl.BlockSpec((1, 1, 1), lambda o, hi: (o, 0, 0)),
        scratch_shapes=[
            pltpu.VMEM((n, w), jnp.float32),
            pltpu.VMEM((n, w), jnp.float32),
            pltpu.VMEM((n, w), jnp.float32),
        ],
        compiler_params=pltpu.CompilerParams(
            dimension_semantics=("parallel", "arbitrary")),
    )(pred_stack, gt_stack)

    return jnp.sum(per_obj[:, 0, 0])


def binary_dice_loss_multiobj(pred_list, gt_list):
    """Equivalent of BinaryDiceLoss_MultiObj.forward for lists of NCHW arrays."""
    assert len(pred_list) == len(gt_list)
    same = (
        len({p.shape for p in pred_list}) == 1
        and len({g.shape for g in gt_list}) == 1
        and len({p.dtype for p in pred_list}) == 1
        and len({g.dtype for g in gt_list}) == 1
    )
    if same:
        return binary_dice_loss_multiobj_stacked(jnp.stack(pred_list),
                                                 jnp.stack(gt_list))
    total = jnp.float32(0.0)
    for p, g in zip(pred_list, gt_list):
        total = total + binary_dice_loss_multiobj_stacked(p[None], g[None])
    return total


if __name__ == "__main__":
    key = jax.random.PRNGKey(0)
    num_objs, N, C, H, W = 3, 2, 4, 16, 16

    key, kp, kg = jax.random.split(key, 3)
    # Native (narrow) dtypes: soft bf16 predictions, binary bf16 masks.
    pred_stack = jax.random.uniform(
        kp, (num_objs, N, C, H, W), dtype=jnp.float32).astype(jnp.bfloat16)
    gt_stack = (jax.random.uniform(kg, (num_objs, N, C, H, W)) > 0.5
                ).astype(jnp.bfloat16)

    loss = binary_dice_loss_multiobj_stacked(pred_stack, gt_stack)
    jax.block_until_ready(loss)

    # Pure-JAX reference (same math, no Pallas).
    ref = jnp.float32(0.0)
    for i in range(num_objs):
        inp = pred_stack[i, :, 1, :, :].astype(jnp.float32)
        tgt = gt_stack[i, :, 1, :, :].astype(jnp.float32)
        inse = (inp * tgt).sum(axis=(1, 2))
        l = inp.sum(axis=(1, 2))
        r = tgt.sum(axis=(1, 2))
        dice = (2.0 * inse + 1e-05) / (l + r + 1e-05)
        ref = ref + (1.0 - dice.sum() / N)

    assert jnp.allclose(loss, ref, rtol=1e-4, atol=1e-5), (loss, ref)

    # Also exercise the list-based API (mirrors the PyTorch module signature).
    loss_list = binary_dice_loss_multiobj(
        [pred_stack[i] for i in range(num_objs)],
        [gt_stack[i] for i in range(num_objs)])
    jax.block_until_ready(loss_list)
    assert jnp.allclose(loss_list, ref, rtol=1e-4, atol=1e-5), (loss_list, ref)

    print("KERNEL_OK")
</pallas_src>

<mosaic_0001>
module attributes {stable_mosaic.version = 11 : i64} {
  func.func @_dice_kernel(%arg0: i32, %arg1: i32, %arg2: memref<1x2x1x16x16xbf16, #tpu.memory_space<vmem>>, %arg3: memref<1x2x1x16x16xbf16, #tpu.memory_space<vmem>>, %arg4: memref<1x1x1xf32, #tpu.memory_space<vmem>>, %arg5: memref<2x16xf32, #tpu.memory_space<vmem>>, %arg6: memref<2x16xf32, #tpu.memory_space<vmem>>, %arg7: memref<2x16xf32, #tpu.memory_space<vmem>>) attributes {dimension_semantics = [#tpu.dimension_semantics<parallel>, #tpu.dimension_semantics<arbitrary>], iteration_bounds = array<i64: 3, 1>, scalar_prefetch = 0 : i64, scratch_operands = 3 : i64, tpu.core_type = #tpu.core_type<tc>, window_params = [{transform_indices = @transform_0, window_bounds = array<i64: 1, 2, 1, 16, 16>}, {transform_indices = @transform_1, window_bounds = array<i64: 1, 2, 1, 16, 16>}, {transform_indices = @transform_2, window_bounds = array<i64: 1, 1, 1>}]} {
    %c0_i32 = arith.constant 0 : i32
    %0 = arith.cmpi eq, %arg1, %c0_i32 : i32
    %1 = arith.extui %0 : i1 to i32
    %c0_i32_0 = arith.constant 0 : i32
    %2 = arith.cmpi ne, %1, %c0_i32_0 : i32
    scf.if %2 {
      %cst_26 = arith.constant 0.000000e+00 : f32
      %25 = vector.broadcast %cst_26 : f32 to vector<2x16xf32>
      %c0_27 = arith.constant 0 : index
      %c0_28 = arith.constant 0 : index
      %26 = vector.load %arg5[%c0_27, %c0_28] : memref<2x16xf32, #tpu.memory_space<vmem>>, vector<2x16xf32>
      tpu.vector_store %arg5[%c0_27, %c0_28], %25 {strides = array<i32>} : memref<2x16xf32, #tpu.memory_space<vmem>>, vector<2x16xf32>,
      %cst_29 = arith.constant 0.000000e+00 : f32
      %27 = vector.broadcast %cst_29 : f32 to vector<2x16xf32>
      %c0_30 = arith.constant 0 : index
      %c0_31 = arith.constant 0 : index
      %28 = vector.load %arg6[%c0_30, %c0_31] : memref<2x16xf32, #tpu.memory_space<vmem>>, vector<2x16xf32>
      tpu.vector_store %arg6[%c0_30, %c0_31], %27 {strides = array<i32>} : memref<2x16xf32, #tpu.memory_space<vmem>>, vector<2x16xf32>,
      %cst_32 = arith.constant 0.000000e+00 : f32
      %29 = vector.broadcast %cst_32 : f32 to vector<2x16xf32>
      %c0_33 = arith.constant 0 : index
      %c0_34 = arith.constant 0 : index
      %30 = vector.load %arg7[%c0_33, %c0_34] : memref<2x16xf32, #tpu.memory_space<vmem>>, vector<2x16xf32>
      tpu.vector_store %arg7[%c0_33, %c0_34], %29 {strides = array<i32>} : memref<2x16xf32, #tpu.memory_space<vmem>>, vector<2x16xf32>,
    } else {
    }
    %c0 = arith.constant 0 : index
    %c0_1 = arith.constant 0 : index
    %c0_2 = arith.constant 0 : index
    %c0_3 = arith.constant 0 : index
    %c0_4 = arith.constant 0 : index
    %3 = vector.load %arg2[%c0, %c0_1, %c0_2, %c0_3, %c0_4] : memref<1x2x1x16x16xbf16, #tpu.memory_space<vmem>>, vector<1x2x1x16x16xbf16>
    %4 = vector.shape_cast %3 : vector<1x2x1x16x16xbf16> to vector<2x16x16xbf16>
    %5 = arith.extf %4 : vector<2x16x16xbf16> to vector<2x16x16xf32>
    %c0_5 = arith.constant 0 : index
    %c0_6 = arith.constant 0 : index
    %c0_7 = arith.constant 0 : index
    %c0_8 = arith.constant 0 : index
    %c0_9 = arith.constant 0 : index
    %6 = vector.load %arg3[%c0_5, %c0_6, %c0_7, %c0_8, %c0_9] : memref<1x2x1x16x16xbf16, #tpu.memory_space<vmem>>, vector<1x2x1x16x16xbf16>
    %7 = vector.shape_cast %6 : vector<1x2x1x16x16xbf16> to vector<2x16x16xbf16>
    %8 = arith.extf %7 : vector<2x16x16xbf16> to vector<2x16x16xf32>
    %c0_10 = arith.constant 0 : index
    %c0_11 = arith.constant 0 : index
    %9 = vector.load %arg5[%c0_10, %c0_11] : memref<2x16xf32, #tpu.memory_space<vmem>>, vector<2x16xf32>
    %10 = arith.mulf %5, %8 : vector<2x16x16xf32>
    %cst = arith.constant dense<0.000000e+00> : vector<2x16xf32>
    %11 = vector.multi_reduction <add>, %10, %cst [1] : vector<2x16x16xf32> to vector<2x16xf32>
    %12 = arith.addf %9, %11 : vector<2x16xf32>
    %c0_12 = arith.constant 0 : index
    %c0_13 = arith.constant 0 : index
    %13 = vector.load %arg5[%c0_12, %c0_13] : memref<2x16xf32, #tpu.memory_space<vmem>>, vector<2x16xf32>
    tpu.vector_store %arg5[%c0_12, %c0_13], %12 {strides = array<i32>} : memref<2x16xf32, #tpu.memory_space<vmem>>, vector<2x16xf32>,
    %c0_14 = arith.constant 0 : index
    %c0_15 = arith.constant 0 : index
    %14 = vector.load %arg6[%c0_14, %c0_15] : memref<2x16xf32, #tpu.memory_space<vmem>>, vector<2x16xf32>
    %cst_16 = arith.constant dense<0.000000e+00> : vector<2x16xf32>
    %15 = vector.multi_reduction <add>, %5, %cst_16 [1] : vector<2x16x16xf32> to vector<2x16xf32>
    %16 = arith.addf %14, %15 : vector<2x16xf32>
    %c0_17 = arith.constant 0 : index
    %c0_18 = arith.constant 0 : index
    %17 = vector.load %arg6[%c0_17, %c0_18] : memref<2x16xf32, #tpu.memory_space<vmem>>, vector<2x16xf32>
    tpu.vector_store %arg6[%c0_17, %c0_18], %16 {strides = array<i32>} : memref<2x16xf32, #tpu.memory_space<vmem>>, vector<2x16xf32>,
    %c0_19 = arith.constant 0 : index
    %c0_20 = arith.constant 0 : index
    %18 = vector.load %arg7[%c0_19, %c0_20] : memref<2x16xf32, #tpu.memory_space<vmem>>, vector<2x16xf32>
    %cst_21 = arith.constant dense<0.000000e+00> : vector<2x16xf32>
    %19 = vector.multi_reduction <add>, %8, %cst_21 [1] : vector<2x16x16xf32> to vector<2x16xf32>
    %20 = arith.addf %18, %19 : vector<2x16xf32>
    %c0_22 = arith.constant 0 : index
    %c0_23 = arith.constant 0 : index
    %21 = vector.load %arg7[%c0_22, %c0_23] : memref<2x16xf32, #tpu.memory_space<vmem>>, vector<2x16xf32>
    tpu.vector_store %arg7[%c0_22, %c0_23], %20 {strides = array<i32>} : memref<2x16xf32, #tpu.memory_space<vmem>>, vector<2x16xf32>,
    %c0_i32_24 = arith.constant 0 : i32
    %22 = arith.cmpi eq, %arg1, %c0_i32_24 : i32
    %23 = arith.extui %22 : i1 to i32
    %c0_i32_25 = arith.constant 0 : i32
    %24 = arith.cmpi ne, %23, %c0_i32_25 : i32
    scf.if %24 {
      %c0_26 = arith.constant 0 : index
      %c0_27 = arith.constant 0 : index
      %25 = vector.load %arg5[%c0_26, %c0_27] : memref<2x16xf32, #tpu.memory_space<vmem>>, vector<2x16xf32>
      %cst_28 = arith.constant dense<0.000000e+00> : vector<2xf32>
      %26 = vector.multi_reduction <add>, %25, %cst_28 [1] : vector<2x16xf32> to vector<2xf32>
      %27 = vector.shape_cast %26 : vector<2xf32> to vector<2x1xf32>
      %c0_29 = arith.constant 0 : index
      %c0_30 = arith.constant 0 : index
      %28 = vector.load %arg6[%c0_29, %c0_30] : memref<2x16xf32, #tpu.memory_space<vmem>>, vector<2x16xf32>
      %cst_31 = arith.constant dense<0.000000e+00> : vector<2xf32>
      %29 = vector.multi_reduction <add>, %28, %cst_31 [1] : vector<2x16xf32> to vector<2xf32>
      %30 = vector.shape_cast %29 : vector<2xf32> to vector<2x1xf32>
      %c0_32 = arith.constant 0 : index
      %c0_33 = arith.constant 0 : index
      %31 = vector.load %arg7[%c0_32, %c0_33] : memref<2x16xf32, #tpu.memory_space<vmem>>, vector<2x16xf32>
      %cst_34 = arith.constant dense<0.000000e+00> : vector<2xf32>
      %32 = vector.multi_reduction <add>, %31, %cst_34 [1] : vector<2x16xf32> to vector<2xf32>
      %33 = vector.shape_cast %32 : vector<2xf32> to vector<2x1xf32>
      %cst_35 = arith.constant 2.000000e+00 : f32
      %34 = vector.broadcast %cst_35 : f32 to vector<2x1xf32>
      %35 = arith.mulf %34, %27 : vector<2x1xf32>
      %cst_36 = arith.constant 9.99999974E-6 : f32
      %36 = vector.broadcast %cst_36 : f32 to vector<2x1xf32>
      %37 = arith.addf %35, %36 : vector<2x1xf32>
      %38 = arith.addf %30, %33 : vector<2x1xf32>
      %cst_37 = arith.constant 9.99999974E-6 : f32
      %39 = vector.broadcast %cst_37 : f32 to vector<2x1xf32>
      %40 = arith.addf %38, %39 : vector<2x1xf32>
      %41 = arith.divf %37, %40 : vector<2x1xf32>
      %42 = vector.shape_cast %41 : vector<2x1xf32> to vector<1x2x1xf32>
      %cst_38 = arith.constant dense<0.000000e+00> : vector<1xf32>
      %43 = vector.multi_reduction <add>, %42, %cst_38 [1, 2] : vector<1x2x1xf32> to vector<1xf32>
      %44 = vector.shape_cast %43 : vector<1xf32> to vector<1x1x1xf32>
      %45 = vector.extract %44[0, 0, 0] : f32 from vector<1x1x1xf32>
      %cst_39 = arith.constant 2.000000e+00 : f32
      %46 = arith.divf %45, %cst_39 : f32
      %cst_40 = arith.constant 1.000000e+00 : f32
      %47 = arith.subf %cst_40, %46 : f32
      %48 = vector.broadcast %47 : f32 to vector<1x1x1xf32>
      %c0_41 = arith.constant 0 : index
      %c0_42 = arith.constant 0 : index
      %c0_43 = arith.constant 0 : index
      %49 = vector.load %arg4[%c0_41, %c0_42, %c0_43] : memref<1x1x1xf32, #tpu.memory_space<vmem>>, vector<1x1x1xf32>
      tpu.vector_store %arg4[%c0_41, %c0_42, %c0_43], %48 {strides = array<i32>} : memref<1x1x1xf32, #tpu.memory_space<vmem>>, vector<1x1x1xf32>,
    } else {
    }
    return
  }
  func.func @transform_0(%arg0: i32, %arg1: i32) -> (i32, i32, i32, i32, i32) {
    %c0_i32 = arith.constant 0 : i32
    %c1_i32 = arith.constant 1 : i32
    %c0_i32_0 = arith.constant 0 : i32
    %c0_i32_1 = arith.constant 0 : i32
    return %arg0, %c0_i32, %c1_i32, %arg1, %c0_i32_0 : i32, i32, i32, i32, i32
  }
  func.func @transform_1(%arg0: i32, %arg1: i32) -> (i32, i32, i32, i32, i32) {
    %c0_i32 = arith.constant 0 : i32
    %c1_i32 = arith.constant 1 : i32
    %c0_i32_0 = arith.constant 0 : i32
    %c0_i32_1 = arith.constant 0 : i32
    return %arg0, %c0_i32, %c1_i32, %arg1, %c0_i32_0 : i32, i32, i32, i32, i32
  }
  func.func @transform_2(%arg0: i32, %arg1: i32) -> (i32, i32, i32) {
    %c0_i32 = arith.constant 0 : i32
    %c0_i32_0 = arith.constant 0 : i32
    %c0_i32_1 = arith.constant 0 : i32
    return %arg0, %c0_i32, %c0_i32_0 : i32, i32, i32
  }
}

</mosaic_0001>

<llo_original>
// kernel: tpu_custom_call.1
$region0: #{tpu_custom_call.1}
  #allocation0 [shape = 'u32[]', space=smem, size = 0x4, offset = 0x4, fixed_abs, tag = 'smem constant byte address 0x4 - core index']
  #allocation1 [shape = 'u32[72,128]{1,0:T(1,128)}', space=vmem, size = 0x9000, scoped, tag = 'internal scratch']
  #allocation2 [shape = 'f32[2,16]{1,0:T(2,128)}', space=vmem, size = 0x400, scoped, tag = 'scratch operand']
  #allocation3 [shape = 'f32[2,16]{1,0:T(2,128)}', space=vmem, size = 0x400, scoped, tag = 'scratch operand']
  #allocation4 [shape = 'f32[2,16]{1,0:T(2,128)}', space=vmem, size = 0x400, scoped, tag = 'scratch operand']
  #allocation9 [shape = 's32[]', space=sflag, size = 0x4, offset = 0, fixed_abs, tag = 'sflag constant byte address 0x0 - dummy sync flag']
  #allocation11 [shape = 's32[]', space=sflag, size = 0x4, offset = 0, fixed_abs, tag = 'sflag constant byte address 0x0 - dummy sync flag']
  %s0 = inlined_call_operand.hbm [shape: bf16[3,2,4,16,16], index: 0, kind: input, shape index: {}]
  %s1 = inlined_call_operand.hbm [shape: bf16[3,2,4,16,16], index: 1, kind: input, shape index: {}]
  %s2 = inlined_call_operand.vmem [shape: f32[3,1,1], index: 2, kind: output, shape index: {}]
  %s3 = sld [smem:[#allocation0]]
  $region57: #{tpu_custom_call.1} parent=0
    _
  %s5 = ssub.s32 1, %s3
  %s6 = scalar_select 0, %s5, %s3
  $region1: #{tpu_custom_call.1} parent=0
    #allocation5 [shape = 'u8[16384]{0}', space=vmem, size = 0x4000, scoped, tag = 'input window, operand 0']
    #allocation6 [shape = 's32[2]{0}', space=sflag, size = 0x8, scoped, tag = 'scoped memory for tpu_custom_call.1']
    #allocation7 [shape = 'u8[16384]{0}', space=vmem, size = 0x4000, scoped, tag = 'input window, operand 1']
    #allocation8 [shape = 's32[2]{0}', space=sflag, size = 0x8, scoped, tag = 'scoped memory for tpu_custom_call.1']
    %7 = vsyncpa [#allocation6], 0
    %s8 = scalar_lea.sflag [#allocation6], 1
    %9 = vsyncpa %s8, 0
    %10 = vsyncpa [#allocation8], 0
    %s11 = scalar_lea.sflag [#allocation8], 1
    %12 = vsyncpa %s11, 0
    loop: start=0, step=1, limit=5
    $region2: #{tpu_custom_call.1} parent=1 // loop_pre_header
      _
    $region3: #{tpu_custom_call.1} parent=1 // loop_header
      %s14 = sphi 0, %s18
      %p15 = scmp.ge.s32.totalorder %s14, 5
      %s21 = sphi 0, %s33
      %s22 = sphi 0, %s29
      %s23 = sphi 0, %s21
      %s24 = sphi 0, %s22
      %s25 = sphi 0, %s23
      %s26 = sphi 0, %s24
      %s38 = sphi 0, %s40
      %s41 = sphi 0, %s38
      %s42 = sphi 0, %s41
      %s58 = sphi 0, %s42
      %s66 = sphi 0, %s68
      %s69 = sphi 0, %s66
      %s70 = sphi 0, %s69
      %s86 = sphi 0, %s70
      %s92 = sphi 0, %s94
      %s95 = sphi 0, %s92
      %s96 = sphi 0, %s95
      %s112 = sphi 0, %s96
    $region4: #{tpu_custom_call.1} parent=1 // loop_header_branch
      %17 = sbr.rel (%p15) target = $region8
    $region5: #{tpu_custom_call.1} parent=1 // loop_body
      %s19 = ssub.s32 %s14, 1
      %s20 = ssub.s32 %s14, 2
      %s27 = sadd.s32 1, %s22
      %p28 = scmp.ge.s32.totalorder %s27, 1
      %s29 = scalar_select %p28, 0, %s27
      %s30 = sadd.s32 1, %s21
      %s31 = scalar_select %p28, %s30, %s21
      %p32 = scmp.ge.s32.totalorder %s31, 3
      %s33 = scalar_select %p32, 0, %s31
      %s34 = ssub.s32 %s21, %s33
      %s35 = ssub.s32 %s22, %s29
      %s36 = sor.u32 %s34, %s35
      %p37 = scmp.eq.s32.totalorder %s36, 0
      %s39 = sadd.s32 %s38, 1
      %s40 = scalar_select %p37, %s38, %s39
      %p43 = pneg %p37
      %p44 = scmp.eq.s32.totalorder %s14, 2
      %p45 = por %p43, %p44
      %p46 = scmp.ne.s32.totalorder %s38, %s41
      %p47 = scmp.eq.s32.totalorder %s14, 0
      %p48 = por %p46, %p47
      %p49 = scmp.ne.s32.totalorder %s38, %s41
      %p50 = scmp.eq.s32.totalorder %s19, 2
      %p51 = por %p49, %p50
      %p52 = scmp.ne.s32.totalorder %s41, %s42
      %p53 = scmp.eq.s32.totalorder %s19, 0
      %p54 = por %p52, %p53
      %p55 = scmp.ne.s32.totalorder %s41, %s42
      %p56 = scmp.eq.s32.totalorder %s20, 2
      %p57 = por %p55, %p56
      %p59 = scmp.ne.s32.totalorder %s42, %s58
      %p60 = scmp.eq.s32.totalorder %s20, 0
      %p61 = por %p59, %p60
      %s62 = ssub.s32 %s21, %s33
      %s63 = ssub.s32 %s22, %s29
      %s64 = sor.u32 %s62, %s63
      %p65 = scmp.eq.s32.totalorder %s64, 0
      %s67 = sadd.s32 %s66, 1
      %s68 = scalar_select %p65, %s66, %s67
      %p71 = pneg %p65
      %p72 = scmp.eq.s32.totalorder %s14, 2
      %p73 = por %p71, %p72
      %p74 = scmp.ne.s32.totalorder %s66, %s69
      %p75 = scmp.eq.s32.totalorder %s14, 0
      %p76 = por %p74, %p75
      %p77 = scmp.ne.s32.totalorder %s66, %s69
      %p78 = scmp.eq.s32.totalorder %s19, 2
      %p79 = por %p77, %p78
      %p80 = scmp.ne.s32.totalorder %s69, %s70
      %p81 = scmp.eq.s32.totalorder %s19, 0
      %p82 = por %p80, %p81
      %p83 = scmp.ne.s32.totalorder %s69, %s70
      %p84 = scmp.eq.s32.totalorder %s20, 2
      %p85 = por %p83, %p84
      %p87 = scmp.ne.s32.totalorder %s70, %s86
      %p88 = scmp.eq.s32.totalorder %s20, 0
      %p89 = por %p87, %p88
      %s90 = ssub.s32 %s21, %s33
      %p91 = scmp.eq.s32.totalorder %s90, 0
      %s93 = sadd.s32 %s92, 1
      %s94 = scalar_select %p91, %s92, %s93
      %p97 = pneg %p91
      %p98 = scmp.eq.s32.totalorder %s14, 2
      %p99 = por %p97, %p98
      %p100 = scmp.ne.s32.totalorder %s92, %s95
      %p101 = scmp.eq.s32.totalorder %s14, 0
      %p102 = por %p100, %p101
      %p103 = scmp.ne.s32.totalorder %s92, %s95
      %p104 = scmp.eq.s32.totalorder %s19, 2
      %p105 = por %p103, %p104
      %p106 = scmp.ne.s32.totalorder %s95, %s96
      %p107 = scmp.eq.s32.totalorder %s19, 0
      %p108 = por %p106, %p107
      %p109 = scmp.ne.s32.totalorder %s95, %s96
      %p110 = scmp.eq.s32.totalorder %s20, 2
      %p111 = por %p109, %p110
      %p113 = scmp.ne.s32.totalorder %s96, %s112
      %p114 = scmp.eq.s32.totalorder %s20, 0
      %p115 = por %p113, %p114
      %p116 = scmp.le.s32.totalorder 1, %s14
      %p117 = scmp.lt.s32.totalorder %s14, 4
      %p118 = pnand %p116, %p117
      %p119 = pneg %p118
      // Predicated region
      $region9: #{tpu_custom_call.1} parent=5 // pred_check
        _
      $region10: #{tpu_custom_call.1} parent=5 // pred_check_branch
        %121 = sbr.rel (%p118) target = $region12
      $region11: #{tpu_custom_call.1} parent=5 // pred_region
        %s122 = ssub.s32 %s14, 1
      $region12: #{tpu_custom_call.1} parent=5 // pred_fallthru
        _
      %p123 = scmp.lt.s32.totalorder %s14, 3
      // Predicated region
      $region13: #{tpu_custom_call.1} parent=5 // pred_check
        %p124 = pneg %p123
      $region14: #{tpu_custom_call.1} parent=5 // pred_check_branch
        %126 = sbr.rel (%p124) target = $region16
      $region15: #{tpu_custom_call.1} parent=5 // pred_region
        // Predicated region
        $region17: #{tpu_custom_call.1} parent=15 // pred_check
          %p127 = pneg %p48
        $region18: #{tpu_custom_call.1} parent=15 // pred_check_branch
          %129 = sbr.rel (%p127) target = $region20
        $region19: #{tpu_custom_call.1} parent=15 // pred_region
          #allocation10 [shape = 'u32[6]{0}', space=smem, size = 0x18, scoped, tag = 'DMA stride descriptor']
          %s130 = sand.u32 %s38, 1
          %s131 = scalar_lea.sflag [#allocation6], %s130
          %s132 = sand.u32 %s38, 1
          %s133 = smul.addr %s132, 16
          %s134 = scalar_lea.vmem [#allocation5], %s133
          %s135 = smul.u32 2, %s22
          %137 = vsyncadd %s131, 0
          %s138 = sadd.s32 %s135, 2
          %s139 = smul.addr %s21, 16
          %s140 = sadd.s32 %s138, %s139
          %s141 = smul.addr %s140, 4
          %s142 = scalar_lea.hbm %s0, %s141
          %s144 = sshll.u32 1, 14
          %s145 = sxor.u32 4294967295, %s144
          %s147 = sld [smem:[#allocation0]]
          %s148 = sadd.s32 2, %s147
          %s150 = sshll.u32 7, 26
          %s151 = sxor.u32 4294967295, %s150
          %s152 = sand.u32 0, %s151
          %s153 = sshll.u32 %s148, 26
          %s154 = sor.u32 %s152, %s153
          %s155 = sshll.u32 %s142, 4
          %s156 = int_to_ptr.hbm [resolvable:$true] %s155
          %s157 = sshll.u32 %s134, 4
          %s158 = int_to_ptr.vmem [resolvable:$true] %s157
          %164 = sst [smem:[#allocation10]] 512
          %s165 = scalar_lea.smem [#allocation10], 1
          %166 = sst [smem:[%s165]] 128
          %s167 = scalar_lea.smem [#allocation10], 2
          %168 = sst [smem:[%s167]] 2
          %s169 = scalar_lea.smem [#allocation10], 3
          %170 = sst [smem:[%s169]] 64
          %s171 = scalar_lea.smem [#allocation10], 4
          %172 = sst [smem:[%s171]] 64
          %s173 = scalar_lea.smem [#allocation10], 5
          %174 = sst [smem:[%s173]] 4
          %176 = dma.general %s156, 256, %s158, %s131, [#allocation9], [#allocation10], %s154, 0
        $region20: #{tpu_custom_call.1} parent=15 // pred_fallthru
          _
        // Predicated region
        $region21: #{tpu_custom_call.1} parent=15 // pred_check
          %p177 = pneg %p76
        $region22: #{tpu_custom_call.1} parent=15 // pred_check_branch
          %179 = sbr.rel (%p177) target = $region24
        $region23: #{tpu_custom_call.1} parent=15 // pred_region
          #allocation12 [shape = 'u32[6]{0}', space=smem, size = 0x18, scoped, tag = 'DMA stride descriptor']
          %s180 = sand.u32 %s66, 1
          %s181 = scalar_lea.sflag [#allocation8], %s180
          %s182 = sand.u32 %s66, 1
          %s183 = smul.addr %s182, 16
          %s184 = scalar_lea.vmem [#allocation7], %s183
          %s185 = smul.u32 2, %s22
          %187 = vsyncadd %s181, 0
          %s188 = sadd.s32 %s185, 2
          %s189 = smul.addr %s21, 16
          %s190 = sadd.s32 %s188, %s189
          %s191 = smul.addr %s190, 4
          %s192 = scalar_lea.hbm %s1, %s191
          %s194 = sshll.u32 1, 14
          %s195 = sxor.u32 4294967295, %s194
          %s197 = sld [smem:[#allocation0]]
          %s198 = sadd.s32 2, %s197
          %s200 = sshll.u32 7, 26
          %s201 = sxor.u32 4294967295, %s200
          %s202 = sand.u32 0, %s201
          %s203 = sshll.u32 %s198, 26
          %s204 = sor.u32 %s202, %s203
          %s205 = sshll.u32 %s192, 4
          %s206 = int_to_ptr.hbm [resolvable:$true] %s205
          %s207 = sshll.u32 %s184, 4
          %s208 = int_to_ptr.vmem [resolvable:$true] %s207
          %214 = sst [smem:[#allocation12]] 512
          %s215 = scalar_lea.smem [#allocation12], 1
          %216 = sst [smem:[%s215]] 128
          %s217 = scalar_lea.smem [#allocation12], 2
          %218 = sst [smem:[%s217]] 2
          %s219 = scalar_lea.smem [#allocation12], 3
          %220 = sst [smem:[%s219]] 64
          %s221 = scalar_lea.smem [#allocation12], 4
          %222 = sst [smem:[%s221]] 64
          %s223 = scalar_lea.smem [#allocation12], 5
          %224 = sst [smem:[%s223]] 4
          %226 = dma.general %s206, 256, %s208, %s181, [#allocation11], [#allocation12], %s204, 0
        $region24: #{tpu_custom_call.1} parent=15 // pred_fallthru
          _
      $region16: #{tpu_custom_call.1} parent=5 // pred_fallthru
        _
      %p227 = scmp.le.s32.totalorder 1, %s14
      %p228 = scmp.lt.s32.totalorder %s14, 4
      %p229 = pnand %p227, %p228
      %p230 = pneg %p229
      // Predicated region
      $region25: #{tpu_custom_call.1} parent=5 // pred_check
        _
      $region26: #{tpu_custom_call.1} parent=5 // pred_check_branch
        %232 = sbr.rel (%p229) target = $region28
      $region27: #{tpu_custom_call.1} parent=5 // pred_region
        %s233 = ssub.s32 %s14, 1
        %s234 = sand.u32 %s41, 1
        %s235 = scalar_lea.sflag [#allocation6], %s234
        %s236 = sand.u32 %s41, 1
        %s237 = smul.addr %s236, 16
        %s238 = scalar_lea.vmem [#allocation5], %s237
        // Predicated region
        $region29: #{tpu_custom_call.1} parent=27 // pred_check
          %p239 = pneg %p54
        $region30: #{tpu_custom_call.1} parent=27 // pred_check_branch
          %241 = sbr.rel (%p239) target = $region32
        $region31: #{tpu_custom_call.1} parent=27 // pred_region
          %243 = dma.done %s235, 256
        $region32: #{tpu_custom_call.1} parent=27 // pred_fallthru
          _
        %s244 = sand.u32 %s69, 1
        %s245 = scalar_lea.sflag [#allocation8], %s244
        %s246 = sand.u32 %s69, 1
        %s247 = smul.addr %s246, 16
        %s248 = scalar_lea.vmem [#allocation7], %s247
        // Predicated region
        $region33: #{tpu_custom_call.1} parent=27 // pred_check
          %p249 = pneg %p82
        $region34: #{tpu_custom_call.1} parent=27 // pred_check_branch
          %251 = sbr.rel (%p249) target = $region36
        $region35: #{tpu_custom_call.1} parent=27 // pred_region
          %253 = dma.done %s245, 256
        $region36: #{tpu_custom_call.1} parent=27 // pred_fallthru
          _
        %s254 = sand.u32 %s41, 1
        %s255 = scalar_lea.sflag [#allocation6], %s254
        %s256 = sand.u32 %s41, 1
        %s257 = smul.addr %s256, 16
        %s258 = scalar_lea.vmem [#allocation5], %s257
        %p259 = pneg %p54
        %p260 = pneg %p51
        %s261 = sand.u32 %s69, 1
        %s262 = scalar_lea.sflag [#allocation8], %s261
        %s263 = sand.u32 %s69, 1
        %s264 = smul.addr %s263, 16
        %s265 = scalar_lea.vmem [#allocation7], %s264
        %p266 = pneg %p82
        %p267 = pneg %p79
        %p268 = pneg %p108
        %p269 = pneg %p105
        %p270 = scmp.lt.s32.totalorder %s23, 2
        %s271 = scalar_select %p270, %s23, 2
        %s272 = scalar_lea.vmem %s2, %s271
        %s273 = smul.u32 2, %s24
        %s274 = smul.u32 2, %s24
        %p275 = scmp.lt.s32.totalorder %s23, 2
        %s276 = scalar_select %p275, %s23, 2
        %s277 = scalar_lea.vmem %s2, %s276
        %p278 = scmp.eq.s32.totalorder %s24, 0
        // Predicated region
        $region37: #{tpu_custom_call.1} parent=27 // pred_check
          %p279 = pneg %p278
        $region38: #{tpu_custom_call.1} parent=27 // pred_check_branch
          %281 = sbr.rel (%p279) target = $region40
        $region39: #{tpu_custom_call.1} parent=27 // pred_region
          %vm282 = vcmask 123904
          %283 = vst.msk [vmem:[#allocation2] sm:$0x3] %vm282, 0.0
          %284 = vst.msk [vmem:[#allocation3] sm:$0x3] %vm282, 0.0
          %285 = vst.msk [vmem:[#allocation4] sm:$0x3] %vm282, 0.0
        $region40: #{tpu_custom_call.1} parent=27 // pred_fallthru
          _
        %v286 = vld [vmem:[%s238] sm:$0xf]
        %v287 = vld [vmem:[%s238 + $0x4] sm:$0xf]
        %v288 = vld [vmem:[%s238 + $0x8] sm:$0xf]
        %v289 = vld [vmem:[%s238 + $0xc] sm:$0xf]
        %v290 = vunpack.c.l.bf16 %v286
        %v291 = vunpack.c.l.bf16 %v287
        %v292 = vunpack.c.l.bf16 %v288
        %v293 = vunpack.c.l.bf16 %v289
        %v294 = vld [vmem:[%s248] sm:$0xf]
        %v295 = vld [vmem:[%s248 + $0x4] sm:$0xf]
        %v296 = vld [vmem:[%s248 + $0x8] sm:$0xf]
        %v297 = vld [vmem:[%s248 + $0xc] sm:$0xf]
        %v298 = vunpack.c.l.bf16 %v294
        %v299 = vunpack.c.l.bf16 %v295
        %v300 = vunpack.c.l.bf16 %v296
        %v301 = vunpack.c.l.bf16 %v297
        %v302 = vld [vmem:[#allocation2] sm:$0x3]
        %v303 = vmul.f32 %v290, %v298
        %v304 = vmul.f32 %v291, %v299
        %v305 = vmul.f32 %v292, %v300
        %v306 = vmul.f32 %v293, %v301
        %vm307 = vcmask 130048
        %v308 = vsel %vm307, %v303, 0.0
        %v309 = vsel %vm307, %v304, 0.0
        %v310 = vadd.f32 %v308, %v309
        %v311 = vrot.slane %v310, 4
        %v312 = vadd.f32 %v310, %v311
        %v313 = vrot.slane %v312, 2
        %v314 = vadd.f32 %v312, %v313
        %v315 = vrot.slane %v314, 1
        %v316 = vadd.f32 %v314, %v315
        %v317 = vsel %vm307, %v305, 0.0
        %v318 = vsel %vm307, %v306, 0.0
        %v319 = vadd.f32 %v317, %v318
        %v320 = vrot.slane %v319, 4
        %v321 = vadd.f32 %v319, %v320
        %v322 = vrot.slane %v321, 2
        %v323 = vadd.f32 %v321, %v322
        %v324 = vrot.slane %v323, 1
        %v325 = vadd.f32 %v323, %v324
        %vm328 = vcmask 1041409
        %v329 = vsel %vm328, %v325, %v316
        %v331 = vadd.f32 %v302, %v329
        %vm332 = vcmask 123904
        %333 = vst.msk [vmem:[#allocation2] sm:$0x3] %vm332, %v331
        %v334 = vld [vmem:[#allocation3] sm:$0x3]
        %v335 = vsel %vm307, %v290, 0.0
        %v336 = vsel %vm307, %v291, 0.0
        %v337 = vadd.f32 %v335, %v336
        %v338 = vrot.slane %v337, 4
        %v339 = vadd.f32 %v337, %v338
        %v340 = vrot.slane %v339, 2
        %v341 = vadd.f32 %v339, %v340
        %v342 = vrot.slane %v341, 1
        %v343 = vadd.f32 %v341, %v342
        %v344 = vsel %vm307, %v292, 0.0
        %v345 = vsel %vm307, %v293, 0.0
        %v346 = vadd.f32 %v344, %v345
        %v347 = vrot.slane %v346, 4
        %v348 = vadd.f32 %v346, %v347
        %v349 = vrot.slane %v348, 2
        %v350 = vadd.f32 %v348, %v349
        %v351 = vrot.slane %v350, 1
        %v352 = vadd.f32 %v350, %v351
        %v355 = vsel %vm328, %v352, %v343
        %v357 = vadd.f32 %v334, %v355
        %358 = vst.msk [vmem:[#allocation3] sm:$0x3] %vm332, %v357
        %v359 = vld [vmem:[#allocation4] sm:$0x3]
        %v360 = vsel %vm307, %v298, 0.0
        %v361 = vsel %vm307, %v299, 0.0
        %v362 = vadd.f32 %v360, %v361
        %v363 = vrot.slane %v362, 4
        %v364 = vadd.f32 %v362, %v363
        %v365 = vrot.slane %v364, 2
        %v366 = vadd.f32 %v364, %v365
        %v367 = vrot.slane %v366, 1
        %v368 = vadd.f32 %v366, %v367
        %v369 = vsel %vm307, %v300, 0.0
        %v370 = vsel %vm307, %v301, 0.0
        %v371 = vadd.f32 %v369, %v370
        %v372 = vrot.slane %v371, 4
        %v373 = vadd.f32 %v371, %v372
        %v374 = vrot.slane %v373, 2
        %v375 = vadd.f32 %v373, %v374
        %v376 = vrot.slane %v375, 1
        %v377 = vadd.f32 %v375, %v376
        %v380 = vsel %vm328, %v377, %v368
        %v382 = vadd.f32 %v359, %v380
        %383 = vst.msk [vmem:[#allocation4] sm:$0x3] %vm332, %v382
        // Predicated region
        $region41: #{tpu_custom_call.1} parent=27 // pred_check
          %p384 = pneg %p278
        $region42: #{tpu_custom_call.1} parent=27 // pred_check_branch
          %386 = sbr.rel (%p384) target = $region44
        $region43: #{tpu_custom_call.1} parent=27 // pred_region
          %v387 = vld [vmem:[#allocation2] sm:$0x3]
          %v388 = vsel %vm332, %v387, 0.0
          %389 = vadd.xlane.f32.xlu0 %v388
          %v390 = vpop.xlane.xlu0 %389
          %v391 = vld [vmem:[#allocation3] sm:$0x3]
          %v392 = vsel %vm332, %v391, 0.0
          %393 = vadd.xlane.f32.xlu0 %v392
          %v394 = vpop.xlane.xlu0 %393
          %v395 = vld [vmem:[#allocation4] sm:$0x3]
          %v396 = vsel %vm332, %v395, 0.0
          %397 = vadd.xlane.f32.xlu0 %v396
          %v398 = vpop.xlane.xlu0 %397
          %v399 = vmul.f32 %v390, 2.0
          %v400 = vadd.f32 %v399, 1e-05
          %v401 = vadd.f32 %v394, %v398
          %v402 = vadd.f32 %v401, 1e-05
          %v403 = vrcp.pop %v402
          %v404 = vmul.f32 %v402, %v403
          %v405 = vsub.f32 1.0, %v404
          %v406 = vmul.f32 %v403, %v405
          %v407 = vadd.f32 %v403, %v406
          %vm408 = vweird.f32 %v402
          %vm409 = vweird.f32 %v403
          %vm410 = vmor %vm408, %vm409
          %v411 = vsel %vm410, %v403, %v407
          %v412 = vand.u32 2147483647, %v402
          %vm413 = vcmp.eq.f32.partialorder %v412, 8.507059e+37
          %v414 = vand.u32 %v402, 2147483648
          %v415 = vor.u32 1.1754944e-38, %v414
          %v416 = vsel %vm413, %v415, %v411
          %v417 = vmul.f32 %v400, %v416
          %vm418 = vcmask 1024
          %v419 = vsel %vm418, %v417, 0.0
          %420 = vadd.xlane.f32.xlu0 %v419
          %v421 = vpop.xlane.xlu0 %420
          %v422 = vrot.slane %v421, 4
          %v423 = vadd.f32 %v421, %v422
          %v424 = vrot.slane %v423, 2
          %v425 = vadd.f32 %v423, %v424
          %v426 = vrot.slane %v425, 1
          %v427 = vadd.f32 %v425, %v426
          %s428 = vtos %v427
          %v429 = vrcp.pop 2.0
          %v430 = vmul.f32 2.0, %v429
          %v431 = vsub.f32 1.0, %v430
          %v432 = vmul.f32 %v429, %v431
          %v433 = vadd.f32 %v429, %v432
          %vm434 = vweird.f32 %v429
          %v435 = vsel %vm434, %v429, %v433
          %s436 = vtos %v435
          %s437 = smul.f32 %s428, %s436
          %s438 = ssub.f32 1.0, %s437
          %v439 = vstv %s438
          %vm440 = vcmask 0
          %441 = vst.msk [vmem:[%s277] sm:$0x1] %vm440, %v439
        $region44: #{tpu_custom_call.1} parent=27 // pred_fallthru
          _
        %p442 = scmp.lt.s32.totalorder %s23, 2
        %s443 = scalar_select %p442, %s23, 2
        %s444 = scalar_lea.vmem %s2, %s443
        // Predicated region
        $region45: #{tpu_custom_call.1} parent=27 // pred_check
          %p445 = pneg %p105
        $region46: #{tpu_custom_call.1} parent=27 // pred_check_branch
          %447 = sbr.rel (%p445) target = $region48
        $region47: #{tpu_custom_call.1} parent=27 // pred_region
          _
        $region48: #{tpu_custom_call.1} parent=27 // pred_fallthru
          _
      $region28: #{tpu_custom_call.1} parent=5 // pred_fallthru
        _
      %p448 = scmp.le.s32.totalorder 2, %s14
      // Predicated region
      $region49: #{tpu_custom_call.1} parent=5 // pred_check
        %p449 = pneg %p448
      $region50: #{tpu_custom_call.1} parent=5 // pred_check_branch
        %451 = sbr.rel (%p449) target = $region52
      $region51: #{tpu_custom_call.1} parent=5 // pred_region
        %s452 = ssub.s32 %s14, 2
        // Predicated region
        $region53: #{tpu_custom_call.1} parent=51 // pred_check
          %p453 = pneg %p111
        $region54: #{tpu_custom_call.1} parent=51 // pred_check_branch
          %455 = sbr.rel (%p453) target = $region56
        $region55: #{tpu_custom_call.1} parent=51 // pred_region
          %p456 = scmp.lt.s32.totalorder %s25, 2
          %s457 = scalar_select %p456, %s25, 2
          %s458 = scalar_lea.vmem %s2, %s457
        $region56: #{tpu_custom_call.1} parent=51 // pred_fallthru
          _
      $region52: #{tpu_custom_call.1} parent=5 // pred_fallthru
        _
    $region6: #{tpu_custom_call.1} parent=1 // loop_footer
      %s18 = sadd.s32 1, %s14
    $region7: #{tpu_custom_call.1} parent=1 // loop_footer_branch
      %13 = sbr.rel target = $region3
    $region8: #{tpu_custom_call.1} parent=1 // loop_exit
      _
    %459 = vsyncpa [#allocation6], 1
    %s460 = scalar_lea.sflag [#allocation6], 1
    %461 = vsyncpa %s460, 1
    %462 = vsyncpa [#allocation8], 1
    %s463 = scalar_lea.sflag [#allocation8], 1
    %464 = vsyncpa %s463, 1

</llo_original>
